<compile_context>
chip_gen: v7x
topology: tpu7x:2x2x1
jax: 0.10.0
libtpu: 0.0.40
codegen_flags: <defaults>
</compile_context>

<pallas_src>
import functools
import math

import jax
import jax.numpy as jnp
from jax.experimental import pallas as pl
from jax.experimental.pallas import tpu as pltpu


# ---------------------------------------------------------------------------
# VMEM budget: query the chip, leave headroom (v7x: 64 MiB -> 48 MiB,
# v5e/v6e: 128 MiB -> 96 MiB).  Falls back to a safe 48 MiB.
# ---------------------------------------------------------------------------
@functools.lru_cache(maxsize=None)
def _vmem_limit_bytes():
    try:
        cap = int(pltpu.get_tpu_info().vmem_capacity_bytes)
    except Exception:  # noqa: BLE001 - any failure -> conservative default
        cap = 64 * 1024 * 1024
    return int(min(cap * 3 // 4, 96 * 1024 * 1024))


# ---------------------------------------------------------------------------
# Linear kernel: y = x @ W + b.  Rows and d_out tiled; bf16 MXU operands,
# f32 accumulation, f32 bias add.
# ---------------------------------------------------------------------------
def _linear_kernel(x_ref, w_ref, b_ref, o_ref):
    x = x_ref[...]
    if x.dtype != jnp.bfloat16:
        x = x.astype(jnp.bfloat16)
    acc = jnp.dot(x, w_ref[...], preferred_element_type=jnp.float32)
    o_ref[...] = (acc + b_ref[...]).astype(o_ref.dtype)


def _pick_block_cols(d_in, d_out, max_w_bytes=8 * 1024 * 1024):
    """Largest d_out tile (from a 128-multiple list) dividing d_out whose bf16
    weight block stays small; falls back to the full d_out."""
    for cand in (2048, 1024, 512, 256, 128):
        if d_out % cand == 0 and d_in * cand * 2 <= max_w_bytes:
            return cand
    return d_out


def _pick_block_rows(rows, d_in, bn, x_bytes, out_bytes, max_tile_bytes=4 * 1024 * 1024):
    """Largest row tile that divides `rows`, keeps per-buffer footprint a few MiB
    (tiles are double-buffered), and - when possible - yields >= 2 grid steps so
    pipelining / megacore splitting is never defeated."""
    per_row = d_in * x_bytes + bn * out_bytes
    cap = max(8, max_tile_bytes // max(per_row, 1))
    cands = [c for c in (4096, 2048, 1024, 512, 256, 128, 64, 32, 16, 8)
             if rows % c == 0 and c <= cap]
    for c in cands:
        if rows // c >= 2:
            return c
    return cands[0] if cands else rows


def linear(x2d, w, b, *, out_dtype=None):
    rows, d_in = x2d.shape
    d_out = w.shape[1]
    out_dtype = out_dtype if out_dtype is not None else x2d.dtype

    w_bf = w.astype(jnp.bfloat16)                       # one-time wrapper cast
    b_f32 = b.reshape(1, d_out).astype(jnp.float32)

    bn = _pick_block_cols(d_in, d_out)
    br = _pick_block_rows(rows, d_in, bn,
                          jnp.dtype(x2d.dtype).itemsize,
                          jnp.dtype(out_dtype).itemsize)
    grid = (rows // br, d_out // bn)

    cost = pl.CostEstimate(
        flops=2 * rows * d_in * d_out,
        transcendentals=0,
        bytes_accessed=int(rows * d_in * jnp.dtype(x2d.dtype).itemsize
                           + d_in * d_out * 2
                           + rows * d_out * jnp.dtype(out_dtype).itemsize
                           + d_out * 4),
    )

    return pl.pallas_call(
        _linear_kernel,
        out_shape=jax.ShapeDtypeStruct((rows, d_out), out_dtype),
        grid=grid,
        in_specs=[
            pl.BlockSpec((br, d_in), lambda i, j: (i, 0)),   # x row tile
            pl.BlockSpec((d_in, bn), lambda i, j: (0, j)),   # bf16 weight column tile
            pl.BlockSpec((1, bn), lambda i, j: (0, j)),      # bias tile
        ],
        out_specs=pl.BlockSpec((br, bn), lambda i, j: (i, j)),
        compiler_params=pltpu.CompilerParams(
            dimension_semantics=("parallel", "parallel"),
            vmem_limit_bytes=_vmem_limit_bytes(),
        ),
        cost_estimate=cost,
    )(x2d, w_bf, b_f32)


# ---------------------------------------------------------------------------
# Fused attention kernel for one (batch, q-tile) step, all heads in-kernel.
#   q_ref: (TQ, h, d_k)   k_ref/v_ref: (S, h, d_k)   bias_ref: (1, S) additive mask
#   o_ref: (TQ, h, d_k)   optional p_ref: (h, TQ, S)
# ---------------------------------------------------------------------------
def _attention_kernel(q_ref, k_ref, v_ref, bias_ref, o_ref, *p_refs, scale):
    n_heads = q_ref.shape[1]
    bias = bias_ref[...]                                  # (1, S) f32, 0 / -1e9

    for i in range(n_heads):                              # static unroll over heads
        q_i = q_ref[:, i, :].astype(jnp.bfloat16)         # (TQ, d_k)
        k_i = k_ref[:, i, :].astype(jnp.bfloat16)         # (S,  d_k)
        v_i = v_ref[:, i, :].astype(jnp.bfloat16)         # (S,  d_k)

        # scores = (q @ k^T) / sqrt(d_k) + mask_bias   (MXU bf16, f32 accumulate)
        s = jax.lax.dot_general(q_i, k_i, (((1,), (1,)), ((), ())),
                                preferred_element_type=jnp.float32)
        s = s * jnp.float32(scale) + bias                 # (TQ, S), f32

        # Numerically stable softmax over keys (all f32); reciprocal -> EUP slot.
        m = jnp.max(s, axis=-1, keepdims=True)
        e = jnp.exp(s - m)
        denom = jnp.sum(e, axis=-1, keepdims=True)
        p = e * pl.reciprocal(denom, approx=True)

        ctx = jnp.dot(p.astype(jnp.bfloat16), v_i,
                      preferred_element_type=jnp.float32)  # (TQ, d_k)

        o_ref[:, i, :] = ctx.astype(o_ref.dtype)
        if p_refs:
            p_refs[0][i, :, :] = p.astype(p_refs[0].dtype)


def _pick_q_tile(S, h, max_bytes=4 * 1024 * 1024):
    """Largest q tile (multiple of 8) dividing S whose f32 (h, TQ, S) scores block
    stays a few MiB (keeps v7x's smaller VMEM happy)."""
    for cand in (1024, 512, 256, 128, 64, 32, 16, 8):
        if S % cand == 0 and h * cand * S * 4 <= max_bytes:
            return cand
    return S


# ---------------------------------------------------------------------------
# Full forward pass of MultiHeadAttentionBlock.
# ---------------------------------------------------------------------------
def multi_head_attention_forward(query, key, value, mask, params, *, h,
                                 return_attention=True):
    """query/key/value: (B, S, d_model); mask: (B, S) key-padding mask or None.
    Returns (output (B, S, d_model), attention_scores (B, h, S, S)) if
    return_attention else just the output."""
    B, S, D = query.shape
    assert D % h == 0, "d_model must be divisible by h"
    d_k = D // h
    scale = 1.0 / math.sqrt(d_k)

    tq = _pick_q_tile(S, h)

    # --- projections (bf16 activations out; head split is just a reshape) ---
    self_attention = (query is key) and (key is value)
    if self_attention:
        # One fused QKV projection: x @ [Wq|Wk|Wv] + [bq|bk|bv].
        w_qkv = jnp.concatenate([params["w_q"], params["w_k"], params["w_v"]], axis=1)
        b_qkv = jnp.concatenate([params["b_q"], params["b_k"], params["b_v"]])
        qkv = linear(query.reshape(B * S, D), w_qkv, b_qkv, out_dtype=jnp.bfloat16)
        qkv = qkv.reshape(B, S, 3, h, d_k)               # free reshape (contiguous)
        q_arr = k_arr = v_arr = qkv
        q_spec = pl.BlockSpec((None, tq, None, h, d_k), lambda b, qi: (b, qi, 0, 0, 0))
        k_spec = pl.BlockSpec((None, S, None, h, d_k), lambda b, qi: (b, 0, 1, 0, 0))
        v_spec = pl.BlockSpec((None, S, None, h, d_k), lambda b, qi: (b, 0, 2, 0, 0))
    else:
        q_arr = linear(query.reshape(B * S, D), params["w_q"], params["b_q"],
                       out_dtype=jnp.bfloat16).reshape(B, S, h, d_k)
        k_arr = linear(key.reshape(B * S, D), params["w_k"], params["b_k"],
                       out_dtype=jnp.bfloat16).reshape(B, S, h, d_k)
        v_arr = linear(value.reshape(B * S, D), params["w_v"], params["b_v"],
                       out_dtype=jnp.bfloat16).reshape(B, S, h, d_k)
        q_spec = pl.BlockSpec((None, tq, h, d_k), lambda b, qi: (b, qi, 0, 0))
        k_spec = pl.BlockSpec((None, S, h, d_k), lambda b, qi: (b, 0, 0, 0))
        v_spec = pl.BlockSpec((None, S, h, d_k), lambda b, qi: (b, 0, 0, 0))

    # Additive mask bias (torch masked_fill(mask == 0, -1e9) semantics).
    if mask is None:
        bias = jnp.zeros((B, 1, S), jnp.float32)
    else:
        bias = jnp.where(mask.reshape(B, 1, S) == 0,
                         jnp.float32(-1.0e9), jnp.float32(0.0))
    bias_spec = pl.BlockSpec((None, 1, S), lambda b, qi: (b, 0, 0))

    ctx_shape = jax.ShapeDtypeStruct((B, S, h, d_k), jnp.bfloat16)
    ctx_spec = pl.BlockSpec((None, tq, h, d_k), lambda b, qi: (b, qi, 0, 0))
    if return_attention:
        out_shape = (ctx_shape, jax.ShapeDtypeStruct((B, h, S, S), jnp.float32))
        out_specs = (ctx_spec,
                     pl.BlockSpec((None, h, tq, S), lambda b, qi: (b, 0, qi, 0)))
    else:
        out_shape = ctx_shape
        out_specs = ctx_spec

    attn_cost = pl.CostEstimate(
        flops=4 * B * h * S * S * d_k + 6 * B * h * S * S,
        transcendentals=B * h * S * S,
        bytes_accessed=int(3 * B * S * D * 2 + 4 * B * S + B * S * D * 2
                           + (4 * B * h * S * S if return_attention else 0)),
    )

    res = pl.pallas_call(
        functools.partial(_attention_kernel, scale=scale),
        out_shape=out_shape,
        grid=(B, S // tq),
        in_specs=[q_spec, k_spec, v_spec, bias_spec],
        out_specs=out_specs,
        compiler_params=pltpu.CompilerParams(
            dimension_semantics=("parallel", "parallel"),
            vmem_limit_bytes=_vmem_limit_bytes(),
        ),
        cost_estimate=attn_cost,
    )(q_arr, k_arr, v_arr, bias)

    if return_attention:
        ctx, probs = res
    else:
        ctx, probs = res, None

    # Head merge is a free reshape of contiguous trailing dims -> output projection.
    out = linear(ctx.reshape(B * S, D), params["w_out"], params["b_out"],
                 out_dtype=query.dtype).reshape(B, S, D)
    return (out, probs) if return_attention else out


# ---------------------------------------------------------------------------
# Pure-JAX f32 reference (mirrors the PyTorch forward; eval-mode dropout).
# ---------------------------------------------------------------------------
def reference_forward(query, key, value, mask, params, *, h):
    B, S, D = query.shape
    d_k = D // h
    Q = (query @ params["w_q"] + params["b_q"]).reshape(B, S, h, d_k).transpose(0, 2, 1, 3)
    K = (key @ params["w_k"] + params["b_k"]).reshape(B, S, h, d_k).transpose(0, 2, 1, 3)
    V = (value @ params["w_v"] + params["b_v"]).reshape(B, S, h, d_k).transpose(0, 2, 1, 3)
    scores = jnp.einsum("bhqd,bhkd->bhqk", Q, K) / math.sqrt(d_k)
    if mask is not None:
        scores = jnp.where(mask.reshape(B, 1, 1, S) == 0, -1.0e9, scores)
    p = jax.nn.softmax(scores, axis=-1)
    x = jnp.einsum("bhqk,bhkd->bhqd", p, V)
    x = x.transpose(0, 2, 1, 3).reshape(B, S, D)
    return x @ params["w_out"] + params["b_out"], p


if __name__ == "__main__":
    B, S, D, H = 2, 8, 32, 4   # batch, seq_len, d_model, heads (d_k = 8)

    root = jax.random.PRNGKey(0)
    ks = jax.random.split(root, 12)

    x = jax.random.normal(ks[0], (B, S, D), dtype=jnp.float32)
    key_t = jax.random.normal(ks[1], (B, S, D), dtype=jnp.float32)
    value_t = jax.random.normal(ks[2], (B, S, D), dtype=jnp.float32)

    # Key-padding mask: 1 = attend, 0 = masked (last two keys of batch 1 masked).
    mask = jnp.ones((B, S), dtype=jnp.float32).at[1, 6:].set(0.0)

    wscale = 1.0 / math.sqrt(D)
    params = {
        "w_q": jax.random.normal(ks[3], (D, D), jnp.float32) * wscale,
        "b_q": jax.random.normal(ks[4], (D,), jnp.float32) * 0.1,
        "w_k": jax.random.normal(ks[5], (D, D), jnp.float32) * wscale,
        "b_k": jax.random.normal(ks[6], (D,), jnp.float32) * 0.1,
        "w_v": jax.random.normal(ks[7], (D, D), jnp.float32) * wscale,
        "b_v": jax.random.normal(ks[8], (D,), jnp.float32) * 0.1,
        "w_out": jax.random.normal(ks[9], (D, D), jnp.float32) * wscale,
        "b_out": jax.random.normal(ks[10], (D,), jnp.float32) * 0.1,
    }

    # Tolerances reflect bf16 MXU operands vs. a pure-f32 reference.
    OUT_TOL = dict(atol=5e-2, rtol=5e-2)
    ATTN_TOL = dict(atol=2e-2, rtol=2e-2)

    # 1) Self-attention (q = k = v): exercises the fused QKV projection path.
    out, attn = multi_head_attention_forward(x, x, x, mask, params, h=H)
    jax.block_until_ready(out)
    ref_out, ref_attn = reference_forward(x, x, x, mask, params, h=H)
    assert jnp.allclose(out, ref_out, **OUT_TOL), "self-attn output mismatch"
    assert jnp.allclose(attn, ref_attn, **ATTN_TOL), "self-attn probs mismatch"

    # 2) Cross-attention (distinct q/k/v): exercises the separate-projection path.
    out2, attn2 = multi_head_attention_forward(x, key_t, value_t, mask, params, h=H)
    jax.block_until_ready(out2)
    ref_out2, ref_attn2 = reference_forward(x, key_t, value_t, mask, params, h=H)
    assert jnp.allclose(out2, ref_out2, **OUT_TOL), "cross-attn output mismatch"
    assert jnp.allclose(attn2, ref_attn2, **ATTN_TOL), "cross-attn probs mismatch"

    print("KERNEL_OK")
</pallas_src>

<mosaic_0001>
module attributes {stable_mosaic.version = 11 : i64} {
  func.func @_linear_kernel(%arg0: i32, %arg1: i32, %arg2: memref<8x32xf32, #tpu.memory_space<vmem>>, %arg3: memref<32x96xbf16, #tpu.memory_space<vmem>>, %arg4: memref<1x96xf32, #tpu.memory_space<vmem>>, %arg5: memref<8x96xbf16, #tpu.memory_space<vmem>>) attributes {dimension_semantics = [#tpu.dimension_semantics<parallel>, #tpu.dimension_semantics<parallel>], iteration_bounds = array<i64: 2, 1>, scalar_prefetch = 0 : i64, scratch_operands = 0 : i64, tpu.core_type = #tpu.core_type<tc>, window_params = [{transform_indices = @transform_0, window_bounds = array<i64: 8, 32>}, {transform_indices = @transform_1, window_bounds = array<i64: 32, 96>}, {transform_indices = @transform_2, window_bounds = array<i64: 1, 96>}, {transform_indices = @transform_3, window_bounds = array<i64: 8, 96>}]} {
    %c0 = arith.constant 0 : index
    %c0_0 = arith.constant 0 : index
    %0 = vector.load %arg2[%c0, %c0_0] : memref<8x32xf32, #tpu.memory_space<vmem>>, vector<8x32xf32>
    %1 = arith.truncf %0 : vector<8x32xf32> to vector<8x32xbf16>
    %c0_1 = arith.constant 0 : index
    %c0_2 = arith.constant 0 : index
    %2 = vector.load %arg3[%c0_1, %c0_2] : memref<32x96xbf16, #tpu.memory_space<vmem>>, vector<32x96xbf16>
    %cst = arith.constant dense<0.000000e+00> : vector<8x96xf32>
    %3 = tpu.matmul %1, %2, %cst {dimension_numbers = #tpu.dot_dimension_numbers<[1], [0], [0], [1], [0, 0, 1, 1], [], []>} : vector<8x32xbf16>, vector<32x96xbf16>, vector<8x96xf32> -> vector<8x96xf32>
    %c0_3 = arith.constant 0 : index
    %c0_4 = arith.constant 0 : index
    %4 = vector.load %arg4[%c0_3, %c0_4] : memref<1x96xf32, #tpu.memory_space<vmem>>, vector<1x96xf32>
    %5 = vector.broadcast %4 : vector<1x96xf32> to vector<8x96xf32>
    %6 = arith.addf %3, %5 : vector<8x96xf32>
    %7 = arith.truncf %6 : vector<8x96xf32> to vector<8x96xbf16>
    %c0_5 = arith.constant 0 : index
    %c0_6 = arith.constant 0 : index
    %8 = vector.load %arg5[%c0_5, %c0_6] : memref<8x96xbf16, #tpu.memory_space<vmem>>, vector<8x96xbf16>
    tpu.vector_store %arg5[%c0_5, %c0_6], %7 {strides = array<i32>} : memref<8x96xbf16, #tpu.memory_space<vmem>>, vector<8x96xbf16>,
    return
  }
  func.func @transform_0(%arg0: i32, %arg1: i32) -> (i32, i32) {
    %c0_i32 = arith.constant 0 : i32
    %c0_i32_0 = arith.constant 0 : i32
    return %arg0, %c0_i32 : i32, i32
  }
  func.func @transform_1(%arg0: i32, %arg1: i32) -> (i32, i32) {
    %c0_i32 = arith.constant 0 : i32
    %c0_i32_0 = arith.constant 0 : i32
    return %c0_i32, %arg1 : i32, i32
  }
  func.func @transform_2(%arg0: i32, %arg1: i32) -> (i32, i32) {
    %c0_i32 = arith.constant 0 : i32
    %c0_i32_0 = arith.constant 0 : i32
    return %c0_i32, %arg1 : i32, i32
  }
  func.func @transform_3(%arg0: i32, %arg1: i32) -> (i32, i32) {
    %c0_i32 = arith.constant 0 : i32
    return %arg0, %arg1 : i32, i32
  }
}

</mosaic_0001>

<llo_original>
// kernel: tpu_custom_call.1
$region0: #{tpu_custom_call.1}
  #allocation0 [shape = 'u32[]', space=smem, size = 0x4, offset = 0x4, fixed_abs, tag = 'smem constant byte address 0x4 - core index']
  #allocation1 [shape = 'u32[144,128]{1,0:T(1,128)}', space=vmem, size = 0x12000, scoped, tag = 'internal scratch']
  %s0 = inlined_call_operand.hbm [shape: f32[16,32], index: 0, kind: input, shape index: {}]
  %s1 = inlined_call_operand.hbm [shape: bf16[32,96], index: 1, kind: input, shape index: {}]
  %s2 = inlined_call_operand.vmem [shape: f32[1,96], index: 2, kind: input, shape index: {}]
  %s3 = inlined_call_operand.hbm [shape: bf16[16,96], index: 3, kind: output, shape index: {}]
  %s4 = sld [smem:[#allocation0]]
  $region53: #{tpu_custom_call.1} parent=0
    _
  %s6 = ssub.s32 1, %s4
  %s7 = scalar_select 0, %s6, %s4
  $region1: #{tpu_custom_call.1} parent=0
    #allocation2 [shape = 'u8[8192]{0}', space=vmem, size = 0x2000, scoped, tag = 'input window, operand 0']
    #allocation3 [shape = 's32[2]{0}', space=sflag, size = 0x8, scoped, tag = 'scoped memory for tpu_custom_call.1']
    #allocation4 [shape = 's32[2]{0}', space=sflag, size = 0x8, scoped, tag = 'scoped memory for tpu_custom_call.1']
    #allocation5 [shape = 'u8[8192]{0}', space=vmem, size = 0x2000, scoped, tag = 'input window, operand 1, single buffered']
    #allocation6 [shape = 's32[1]{0}', space=sflag, size = 0x4, scoped, tag = 'scoped memory for tpu_custom_call.1']
    #allocation7 [shape = 'u8[4096]{0}', space=vmem, size = 0x1000, scoped, tag = 'output window, operand 0']
    %8 = vsyncpa [#allocation3], 0
    %s9 = scalar_lea.sflag [#allocation3], 1
    %10 = vsyncpa %s9, 0
    %11 = vsyncpa [#allocation6], 0
    %12 = vsyncpa [#allocation4], 0
    %s13 = scalar_lea.sflag [#allocation4], 1
    %14 = vsyncpa %s13, 0
    loop: start=0, step=1, limit=4
    $region2: #{tpu_custom_call.1} parent=1 // loop_pre_header
      _
    $region3: #{tpu_custom_call.1} parent=1 // loop_header
      %s16 = sphi 0, %s20
      %p17 = scmp.ge.s32.totalorder %s16, 4
      %s23 = sphi 0, %s35
      %s24 = sphi 0, %s31
      %s25 = sphi 0, %s23
      %s26 = sphi 0, %s24
      %s27 = sphi 0, %s25
      %s28 = sphi 0, %s26
      %s38 = sphi 0, %s40
      %s41 = sphi 0, %s38
      %s42 = sphi 0, %s41
      %s58 = sphi 0, %s42
      %s64 = sphi 0, %s66
      %s67 = sphi 0, %s64
      %s68 = sphi 0, %s67
      %s84 = sphi 0, %s68
      %s90 = sphi 0, %s92
      %s93 = sphi 0, %s90
      %s94 = sphi 0, %s93
      %s110 = sphi 0, %s94
      %s118 = sphi 0, %s120
      %s121 = sphi 0, %s118
      %s122 = sphi 0, %s121
      %s138 = sphi 0, %s122
    $region4: #{tpu_custom_call.1} parent=1 // loop_header_branch
      %19 = sbr.rel (%p17) target = $region8
    $region5: #{tpu_custom_call.1} parent=1 // loop_body
      %s21 = ssub.s32 %s16, 1
      %s22 = ssub.s32 %s16, 2
      %s29 = sadd.s32 1, %s24
      %p30 = scmp.ge.s32.totalorder %s29, 1
      %s31 = scalar_select %p30, 0, %s29
      %s32 = sadd.s32 1, %s23
      %s33 = scalar_select %p30, %s32, %s23
      %p34 = scmp.ge.s32.totalorder %s33, 2
      %s35 = scalar_select %p34, 0, %s33
      %s36 = ssub.s32 %s23, %s35
      %p37 = scmp.eq.s32.totalorder %s36, 0
      %s39 = sadd.s32 %s38, 1
      %s40 = scalar_select %p37, %s38, %s39
      %p43 = pneg %p37
      %p44 = scmp.eq.s32.totalorder %s16, 1
      %p45 = por %p43, %p44
      %p46 = scmp.ne.s32.totalorder %s38, %s41
      %p47 = scmp.eq.s32.totalorder %s16, 0
      %p48 = por %p46, %p47
      %p49 = scmp.ne.s32.totalorder %s38, %s41
      %p50 = scmp.eq.s32.totalorder %s21, 1
      %p51 = por %p49, %p50
      %p52 = scmp.ne.s32.totalorder %s41, %s42
      %p53 = scmp.eq.s32.totalorder %s21, 0
      %p54 = por %p52, %p53
      %p55 = scmp.ne.s32.totalorder %s41, %s42
      %p56 = scmp.eq.s32.totalorder %s22, 1
      %p57 = por %p55, %p56
      %p59 = scmp.ne.s32.totalorder %s42, %s58
      %p60 = scmp.eq.s32.totalorder %s22, 0
      %p61 = por %p59, %p60
      %s62 = ssub.s32 %s24, %s31
      %p63 = scmp.eq.s32.totalorder %s62, 0
      %s65 = sadd.s32 %s64, 1
      %s66 = scalar_select %p63, %s64, %s65
      %p69 = pneg %p63
      %p70 = scmp.eq.s32.totalorder %s16, 1
      %p71 = por %p69, %p70
      %p72 = scmp.ne.s32.totalorder %s64, %s67
      %p73 = scmp.eq.s32.totalorder %s16, 0
      %p74 = por %p72, %p73
      %p75 = scmp.ne.s32.totalorder %s64, %s67
      %p76 = scmp.eq.s32.totalorder %s21, 1
      %p77 = por %p75, %p76
      %p78 = scmp.ne.s32.totalorder %s67, %s68
      %p79 = scmp.eq.s32.totalorder %s21, 0
      %p80 = por %p78, %p79
      %p81 = scmp.ne.s32.totalorder %s67, %s68
      %p82 = scmp.eq.s32.totalorder %s22, 1
      %p83 = por %p81, %p82
      %p85 = scmp.ne.s32.totalorder %s68, %s84
      %p86 = scmp.eq.s32.totalorder %s22, 0
      %p87 = por %p85, %p86
      %s88 = ssub.s32 %s24, %s31
      %p89 = scmp.eq.s32.totalorder %s88, 0
      %s91 = sadd.s32 %s90, 1
      %s92 = scalar_select %p89, %s90, %s91
      %p95 = pneg %p89
      %p96 = scmp.eq.s32.totalorder %s16, 1
      %p97 = por %p95, %p96
      %p98 = scmp.ne.s32.totalorder %s90, %s93
      %p99 = scmp.eq.s32.totalorder %s16, 0
      %p100 = por %p98, %p99
      %p101 = scmp.ne.s32.totalorder %s90, %s93
      %p102 = scmp.eq.s32.totalorder %s21, 1
      %p103 = por %p101, %p102
      %p104 = scmp.ne.s32.totalorder %s93, %s94
      %p105 = scmp.eq.s32.totalorder %s21, 0
      %p106 = por %p104, %p105
      %p107 = scmp.ne.s32.totalorder %s93, %s94
      %p108 = scmp.eq.s32.totalorder %s22, 1
      %p109 = por %p107, %p108
      %p111 = scmp.ne.s32.totalorder %s94, %s110
      %p112 = scmp.eq.s32.totalorder %s22, 0
      %p113 = por %p111, %p112
      %s114 = ssub.s32 %s23, %s35
      %s115 = ssub.s32 %s24, %s31
      %s116 = sor.u32 %s114, %s115
      %p117 = scmp.eq.s32.totalorder %s116, 0
      %s119 = sadd.s32 %s118, 1
      %s120 = scalar_select %p117, %s118, %s119
      %p123 = pneg %p117
      %p124 = scmp.eq.s32.totalorder %s16, 1
      %p125 = por %p123, %p124
      %p126 = scmp.ne.s32.totalorder %s118, %s121
      %p127 = scmp.eq.s32.totalorder %s16, 0
      %p128 = por %p126, %p127
      %p129 = scmp.ne.s32.totalorder %s118, %s121
      %p130 = scmp.eq.s32.totalorder %s21, 1
      %p131 = por %p129, %p130
      %p132 = scmp.ne.s32.totalorder %s121, %s122
      %p133 = scmp.eq.s32.totalorder %s21, 0
      %p134 = por %p132, %p133
      %p135 = scmp.ne.s32.totalorder %s121, %s122
      %p136 = scmp.eq.s32.totalorder %s22, 1
      %p137 = por %p135, %p136
      %p139 = scmp.ne.s32.totalorder %s122, %s138
      %p140 = scmp.eq.s32.totalorder %s22, 0
      %p141 = por %p139, %p140
      %p142 = scmp.le.s32.totalorder 1, %s16
      %p143 = scmp.lt.s32.totalorder %s16, 3
      %p144 = pnand %p142, %p143
      %p145 = pneg %p144
      // Predicated region
      $region9: #{tpu_custom_call.1} parent=5 // pred_check
        _
      $region10: #{tpu_custom_call.1} parent=5 // pred_check_branch
        %147 = sbr.rel (%p144) target = $region12
      $region11: #{tpu_custom_call.1} parent=5 // pred_region
        %s148 = ssub.s32 %s16, 1
        // Predicated region
        $region13: #{tpu_custom_call.1} parent=11 // pred_check
          %p149 = pneg %p80
        $region14: #{tpu_custom_call.1} parent=11 // pred_check_branch
          %151 = sbr.rel (%p149) target = $region16
        $region15: #{tpu_custom_call.1} parent=11 // pred_region
          %s153 = ssub.s32 256, 256
          %154 = vsyncadd [#allocation6], %s153
          %s155 = smul.addr %s26, 64
          %s156 = scalar_lea.hbm %s1, %s155
          %s157 = sshll.u32 [#allocation5], 4
          %s158 = int_to_ptr.vmem [resolvable:$true] %s157
          %163 = dma.hbm_to_vmem [thread:$0]  %s156, 256, %s158, [#allocation6], 64, 64, 4
        $region16: #{tpu_custom_call.1} parent=11 // pred_fallthru
          _
        // Predicated region
        $region17: #{tpu_custom_call.1} parent=11 // pred_check
          %p164 = pneg %p106
        $region18: #{tpu_custom_call.1} parent=11 // pred_check_branch
          %166 = sbr.rel (%p164) target = $region20
        $region19: #{tpu_custom_call.1} parent=11 // pred_region
          %p167 = scmp.lt.s32.totalorder %s26, 0
          %s168 = scalar_select %p167, %s26, 0
          %s169 = scalar_lea.vmem %s2, %s168
        $region20: #{tpu_custom_call.1} parent=11 // pred_fallthru
          _
      $region12: #{tpu_custom_call.1} parent=5 // pred_fallthru
        _
      %p170 = scmp.lt.s32.totalorder %s16, 2
      // Predicated region
      $region21: #{tpu_custom_call.1} parent=5 // pred_check
        %p171 = pneg %p170
      $region22: #{tpu_custom_call.1} parent=5 // pred_check_branch
        %173 = sbr.rel (%p171) target = $region24
      $region23: #{tpu_custom_call.1} parent=5 // pred_region
        // Predicated region
        $region25: #{tpu_custom_call.1} parent=23 // pred_check
          %p174 = pneg %p48
        $region26: #{tpu_custom_call.1} parent=23 // pred_check_branch
          %176 = sbr.rel (%p174) target = $region28
        $region27: #{tpu_custom_call.1} parent=23 // pred_region
          %s177 = sand.u32 %s38, 1
          %s178 = scalar_lea.sflag [#allocation3], %s177
          %s179 = sand.u32 %s38, 1
          %s180 = smul.addr %s179, 8
          %s181 = scalar_lea.vmem [#allocation2], %s180
          %s183 = ssub.s32 128, 128
          %184 = vsyncadd %s178, %s183
          %s185 = smul.addr %s23, 128
          %s186 = scalar_lea.hbm %s0, %s185
          %s188 = sshll.u32 %s181, 4
          %s189 = int_to_ptr.vmem [resolvable:$true] %s188
          %191 = dma.hbm_to_vmem [thread:$0]  %s186, 128, %s189, %s178
        $region28: #{tpu_custom_call.1} parent=23 // pred_fallthru
          _
      $region24: #{tpu_custom_call.1} parent=5 // pred_fallthru
        _
      %p192 = scmp.le.s32.totalorder 1, %s16
      %p193 = scmp.lt.s32.totalorder %s16, 3
      %p194 = pnand %p192, %p193
      %p195 = pneg %p194
      // Predicated region
      $region29: #{tpu_custom_call.1} parent=5 // pred_check
        _
      $region30: #{tpu_custom_call.1} parent=5 // pred_check_branch
        %197 = sbr.rel (%p194) target = $region32
      $region31: #{tpu_custom_call.1} parent=5 // pred_region
        %s198 = ssub.s32 %s16, 1
        %s199 = sand.u32 %s41, 1
        %s200 = scalar_lea.sflag [#allocation3], %s199
        %s201 = sand.u32 %s41, 1
        %s202 = smul.addr %s201, 8
        %s203 = scalar_lea.vmem [#allocation2], %s202
        // Predicated region
        $region33: #{tpu_custom_call.1} parent=31 // pred_check
          %p204 = pneg %p54
        $region34: #{tpu_custom_call.1} parent=31 // pred_check_branch
          %206 = sbr.rel (%p204) target = $region36
        $region35: #{tpu_custom_call.1} parent=31 // pred_region
          %207 = dma.done %s200, 128
        $region36: #{tpu_custom_call.1} parent=31 // pred_fallthru
          _
        // Predicated region
        $region37: #{tpu_custom_call.1} parent=31 // pred_check
          %p208 = pneg %p80
        $region38: #{tpu_custom_call.1} parent=31 // pred_check_branch
          %210 = sbr.rel (%p208) target = $region40
        $region39: #{tpu_custom_call.1} parent=31 // pred_region
          %211 = dma.done [#allocation6], 256
        $region40: #{tpu_custom_call.1} parent=31 // pred_fallthru
          _
        %s212 = sand.u32 %s41, 1
        %s213 = scalar_lea.sflag [#allocation3], %s212
        %s214 = sand.u32 %s41, 1
        %s215 = smul.addr %s214, 8
        %s216 = scalar_lea.vmem [#allocation2], %s215
        %p217 = pneg %p54
        %p218 = pneg %p51
        %p219 = pneg %p80
        %p220 = pneg %p77
        %p221 = scmp.lt.s32.totalorder %s26, 0
        %s222 = scalar_select %p221, %s26, 0
        %s223 = scalar_lea.vmem %s2, %s222
        %p224 = pneg %p106
        %p225 = pneg %p103
        %p226 = pneg %p134
        %p227 = pneg %p131
        %s228 = sand.u32 %s121, 1
        %s229 = scalar_lea.sflag [#allocation4], %s228
        %s230 = sand.u32 %s121, 1
        %s231 = smul.addr %s230, 4
        %s232 = scalar_lea.vmem [#allocation7], %s231
        %p233 = scmp.lt.s32.totalorder %s26, 0
        %s234 = scalar_select %p233, %s26, 0
        %s235 = scalar_lea.vmem %s2, %s234
        %v237 = vld [vmem:[%s203] sm:$0xff]
        %v238 = vpack.c.bf16 %v237, %v237
        %v239 = vld [vmem:[#allocation5] sm:$0xf]
        %v240 = vld [vmem:[#allocation5 + $0x4] sm:$0xf]
        %v241 = vld [vmem:[#allocation5 + $0x8] sm:$0xf]
        %v242 = vld [vmem:[#allocation5 + $0xc] sm:$0xf]
        %v243 = vld [vmem:[%s235] sm:$0x1]
        %v245 = vlaneseq
        %v246 = vshrl.u32 %v245, 7
        %v247 = vsub.s32 0, %v246
        %v248 = vrot.slane %v243, %v247
        %v254 = vunpack.c.l.b16 %v239
        %v255 = vunpack.c.l.b16 %v240
        %v256 = vunpack.c.l.b16 %v241
        %v257 = vunpack.c.l.b16 %v242
        %v258 = vpack.c.b16 %v255, %v254
        %v259 = vpack.c.b16 %v257, %v256
        %vm262 = vcmask 261120
        %v264 = vsel %vm262, %v238, 0
        %266 = vmatprep.subr.bf16.mxu0 0
        %267 = vmatpush1.bf16.msra.mxu0 %v258
        %268 = vmatprep.subr.bf16.mxu0 0
        %269 = vmatpush1.bf16.msra.mxu0 %v259
        %270 = vmatprep.subr.bf16.mxu0 0
        %271 = vmatpush1.bf16.msra.mxu0 0
        %272 = vmatprep.subr.bf16.mxu0 0
        %273 = vmatpush1.bf16.msra.mxu0 0
        %274 = vmatprep.subr.bf16.mxu0 0
        %275 = vmatpush1.bf16.msra.mxu0 0
        %276 = vmatprep.subr.bf16.mxu0 0
        %277 = vmatpush1.bf16.msra.mxu0 0
        %278 = vmatprep.subr.bf16.mxu0 0
        %279 = vmatpush1.bf16.msra.mxu0 0
        %280 = vmatprep.subr.bf16.mxu0 0
        %281 = vmatpush1.bf16.msra.mxu0 0
        %282 = vmatprep.subr.bf16.mxu0 0
        %283 = vmatpush1.bf16.msra.mxu0 0
        %284 = vmatprep.subr.bf16.mxu0 0
        %285 = vmatpush1.bf16.msra.mxu0 0
        %286 = vmatprep.subr.bf16.mxu0 0
        %287 = vmatpush1.bf16.msra.mxu0 0
        %288 = vmatprep.subr.bf16.mxu0 0
        %289 = vmatpush1.bf16.msra.mxu0 0
        %290 = vmatprep.subr.bf16.mxu0 0
        %291 = vmatpush1.bf16.msra.mxu0 0
        %292 = vmatprep.subr.bf16.mxu0 0
        %293 = vmatpush1.bf16.msra.mxu0 0
        %294 = vmatprep.subr.bf16.mxu0 0
        %295 = vmatpush1.bf16.msra.mxu0 0
        %296 = vmatprep.subr.bf16.mxu0 0
        %297 = vmatpush1.bf16.msra.mxu0 0
        %298 = vmatprep.mubr.bf16.mxu0 0
        %299 = vmatmul.mubr.bf16.gmra.mrb[0].mxu0 %v264
        %v300 = vpop.f32.mrb[0].mxu0
        %v301 = vadd.f32 %v248, %v300
        %v302 = vpop.f32.mrb[0].mxu0
        %v303 = vpop.f32.mrb[0].mxu0
        %v304 = vpop.f32.mrb[0].mxu0
        %305 = vdwg.mxu0
        %v306 = vpack.c.bf16 %v301, %v301
        %vm307 = vcmask 781312
        %308 = vst.msk [vmem:[%s232] sm:$0xf] %vm307, %v306
        %s309 = sand.u32 %s121, 1
        %s310 = scalar_lea.sflag [#allocation4], %s309
        %s311 = sand.u32 %s121, 1
        %s312 = smul.addr %s311, 4
        %s313 = scalar_lea.vmem [#allocation7], %s312
        // Predicated region
        $region41: #{tpu_custom_call.1} parent=31 // pred_check
          %p314 = pneg %p131
        $region42: #{tpu_custom_call.1} parent=31 // pred_check_branch
          %316 = sbr.rel (%p314) target = $region44
        $region43: #{tpu_custom_call.1} parent=31 // pred_region
          %s318 = ssub.s32 64, 64
          %319 = vsyncadd %s310, %s318
          %s320 = sadd.s32 %s26, %s25
          %s321 = smul.addr %s320, 64
          %s322 = scalar_lea.hbm %s3, %s321
          %s324 = sshll.u32 %s313, 4
          %s325 = int_to_ptr.vmem [resolvable:$true] %s324
          %327 = dma.vmem_to_hbm [thread:$0]  %s325, 64, %s322, %s310
        $region44: #{tpu_custom_call.1} parent=31 // pred_fallthru
          _
      $region32: #{tpu_custom_call.1} parent=5 // pred_fallthru
        _
      %p328 = scmp.le.s32.totalorder 2, %s16
      // Predicated region
      $region45: #{tpu_custom_call.1} parent=5 // pred_check
        %p329 = pneg %p328
      $region46: #{tpu_custom_call.1} parent=5 // pred_check_branch
        %331 = sbr.rel (%p329) target = $region48
      $region47: #{tpu_custom_call.1} parent=5 // pred_region
        %s332 = ssub.s32 %s16, 2
        // Predicated region
        $region49: #{tpu_custom_call.1} parent=47 // pred_check
          %p333 = pneg %p137
        $region50: #{tpu_custom_call.1} parent=47 // pred_check_branch
          %335 = sbr.rel (%p333) target = $region52
        $region51: #{tpu_custom_call.1} parent=47 // pred_region
          %s336 = sand.u32 %s122, 1
          %s337 = scalar_lea.sflag [#allocation4], %s336
          %s338 = sand.u32 %s122, 1
          %s339 = smul.addr %s338, 4
          %s340 = scalar_lea.vmem [#allocation7], %s339
          %341 = dma.done %s337, 64
        $region52: #{tpu_custom_call.1} parent=47 // pred_fallthru
          _
      $region48: #{tpu_custom_call.1} parent=5 // pred_fallthru
        _
    $region6: #{tpu_custom_call.1} parent=1 // loop_footer
      %s20 = sadd.s32 1, %s16
    $region7: #{tpu_custom_call.1} parent=1 // loop_footer_branch
      %15 = sbr.rel target = $region3
    $region8: #{tpu_custom_call.1} parent=1 // loop_exit
      _
    %342 = vsyncpa [#allocation3], 1
    %s343 = scalar_lea.sflag [#allocation3], 1
    %344 = vsyncpa %s343, 1
    %345 = vsyncpa [#allocation6], 1
    %346 = vsyncpa [#allocation4], 1
    %s347 = scalar_lea.sflag [#allocation4], 1
    %348 = vsyncpa %s347, 1

</llo_original>
